<compile_context>
chip_gen: v5e
topology: v5e:2x2
jax: 0.10.0
libtpu: 0.0.40
codegen_flags: <defaults>
</compile_context>

<pallas_src>
from functools import partial

import jax
import jax.numpy as jnp
from jax.experimental import pallas as pl
from jax.experimental.pallas import tpu as pltpu

_CSLOT = 8                        # rows per conv tap (one f32 sublane tile)
_NTAPS = 9                        # 3x3 taps
_KROWS = (_NTAPS + 1) * _CSLOT    # 72 tap rows + 8-row bias slot (row 72 = ones)
_IMGS_PER_STEP = 16               # max images concatenated per grid step


def _fused_kernel(x_ref, w1_ref, w2_ref, f0_ref, f2_ref, patch_ref, *, H, W):
    """Conv3x3(same) -> ReLU -> Conv3x3(same) on B lane-concatenated images.

      x_ref:     (Cin,  B*HW)   B images, channels on sublanes, spatial+batch on lanes
      w1_ref:    (Cmid, 80)     conv1 weights; col = tap*8 + cin, col 72 = bias
      w2_ref:    (Cout, 80)     conv2 weights; col = tap*8 + cmid, col 72 = bias
      f0_ref:    (Cmid, B*HW)   traced depth-0 activation (conv1, pre-ReLU)
      f2_ref:    (Cout, B*HW)   traced depth-2 activation (conv2, pre-ReLU)
      patch_ref: (80,   B*HW)   im2col scratch shared by both convs
    """
    BHW = x_ref.shape[1]
    dtype = patch_ref.dtype
    log2w = W.bit_length() - 1

    # Per-image-local coordinates of every lane position (H, W are powers of 2),
    # so roll wraparound across image seams is masked like the padded border.
    pos = jax.lax.broadcasted_iota(jnp.int32, (1, BHW), 1)
    col = jnp.bitwise_and(pos, W - 1)
    row = jnp.bitwise_and(pos >> log2w, H - 1)
    row_ok = {-1: row >= 1, 0: None, 1: row <= H - 2}
    col_ok = {-1: col >= 1, 0: None, 1: col <= W - 2}

    # Hoisted combined boundary masks (8 non-trivial taps), reused by both convs.
    valid = {}
    for dh in (-1, 0, 1):
        for dw in (-1, 0, 1):
            ms = [m for m in (row_ok[dh], col_ok[dw]) if m is not None]
            if not ms:
                valid[(dh, dw)] = None
            elif len(ms) == 1:
                valid[(dh, dw)] = ms[0]
            else:
                valid[(dh, dw)] = jnp.logical_and(*ms)

    def pad8(a):
        # Pad channel rows up to a full 8-row sublane tile (free: same vregs).
        r = a.shape[0]
        if r == _CSLOT:
            return a
        return jnp.concatenate(
            [a, jnp.zeros((_CSLOT - r, BHW), a.dtype)], axis=0)

    def fill_patches(src8):
        # src8: (8, BHW).  Every tap write covers its full 8-row slot, so no
        # scratch zero-fill is needed and no stale/uninitialized row is read.
        for kh in range(3):
            dh = kh - 1
            for kw in range(3):
                dw = kw - 1
                off = dh * W + dw                      # out[p] reads src[p + off]
                if off == 0:
                    shifted = src8
                else:
                    shifted = pltpu.roll(src8, (-off) % BHW, axis=1)
                v = valid[(dh, dw)]
                if v is not None:
                    shifted = jnp.where(v, shifted, 0.0)
                tap = kh * 3 + kw
                patch_ref[tap * _CSLOT:(tap + 1) * _CSLOT, :] = shifted

    # Bias slot (rows 72..79): row 72 = ones (multiplies the bias weight column),
    # rows 73..79 = zeros (meet zero weight columns).  Rewritten every step so the
    # scratch never exposes uninitialized VMEM, even with a per-core grid split.
    bias_slot = (jax.lax.broadcasted_iota(jnp.int32, (_CSLOT, BHW), 0) == 0)
    patch_ref[_NTAPS * _CSLOT:, :] = bias_slot.astype(dtype)

    # ---- depth 0: Conv2d(Cin -> Cmid), traced --------------------------------
    fill_patches(pad8(x_ref[...]))
    f0 = jnp.dot(w1_ref[...], patch_ref[...], preferred_element_type=jnp.float32)
    f0_ref[...] = f0.astype(f0_ref.dtype)

    # ---- depth 1: ReLU (stays on-chip, never written to HBM) -----------------
    h = jnp.maximum(f0, 0.0)

    # ---- depth 2: Conv2d(Cmid -> Cout), traced -------------------------------
    fill_patches(pad8(h.astype(dtype)))
    f2 = jnp.dot(w2_ref[...], patch_ref[...], preferred_element_type=jnp.float32)
    f2_ref[...] = f2.astype(f2_ref.dtype)
    # depth 3 (final ReLU) is untraced and unused -> intentionally not computed.


@jax.jit
def _fused_traced_convs(x_nchw, w1_flat, w2_flat):
    """x_nchw: (N, Cin, H, W) f32.  Returns (f0, f2), each (N, C, H, W)."""
    N, Cin, H, W = x_nchw.shape
    assert H & (H - 1) == 0 and W & (W - 1) == 0, "masks use bitwise local coords"
    HW = H * W
    Cmid = w1_flat.shape[0]
    Cout = w2_flat.shape[0]

    # Batch B images per grid step; keep >= 2 grid steps whenever N >= 2 so the
    # "parallel" grid axis can still be split across v7x's two TensorCores.
    # TODO(synk): for N == 1 a Cout/spatial split would be needed to use both TCs.
    B = max(1, min(_IMGS_PER_STEP, pl.cdiv(N, 2)))
    steps = pl.cdiv(N, B)
    Npad = steps * B

    # Lane-dense "wide" layout: channels on sublanes, all images concatenated
    # along the lane axis -> one (C, 80) @ (80, B*HW) matmul per conv per step.
    # (Wrapper transposes are layout plumbing done once by XLA in HBM.)
    x_flat = x_nchw.reshape(N, Cin, HW)
    if Npad != N:
        x_flat = jnp.pad(x_flat, ((0, Npad - N), (0, 0), (0, 0)))
    x_wide = x_flat.transpose(1, 0, 2).reshape(Cin, Npad * HW)

    kernel = partial(_fused_kernel, H=H, W=W)
    f0_w, f2_w = pl.pallas_call(
        kernel,
        out_shape=(jax.ShapeDtypeStruct((Cmid, Npad * HW), x_nchw.dtype),
                   jax.ShapeDtypeStruct((Cout, Npad * HW), x_nchw.dtype)),
        grid=(steps,),
        in_specs=[
            pl.BlockSpec((Cin, B * HW), lambda g: (0, g)),
            pl.BlockSpec((Cmid, _KROWS), lambda g: (0, 0)),
            pl.BlockSpec((Cout, _KROWS), lambda g: (0, 0)),
        ],
        out_specs=(
            pl.BlockSpec((Cmid, B * HW), lambda g: (0, g)),
            pl.BlockSpec((Cout, B * HW), lambda g: (0, g)),
        ),
        scratch_shapes=[pltpu.VMEM((_KROWS, B * HW), jnp.float32)],
        compiler_params=pltpu.CompilerParams(
            dimension_semantics=("parallel",)),
    )(x_wide, w1_flat, w2_flat)

    def unwiden(f_wide, C):
        f = f_wide.reshape(C, Npad, HW).transpose(1, 0, 2)[:N]
        return f.reshape(N, C, H, W)

    return unwiden(f0_w, Cmid), unwiden(f2_w, Cout)


def _flatten_conv_weights(w_oihw, bias):
    """(Cout, Cin, 3, 3) + (Cout,) -> (Cout, 80); col = tap*8 + cin, col 72 = bias."""
    co, ci = w_oihw.shape[0], w_oihw.shape[1]
    w = jnp.transpose(w_oihw, (2, 3, 1, 0))                       # (3, 3, ci, co)
    w = jnp.pad(w, ((0, 0), (0, 0), (0, _CSLOT - ci), (0, 0)))    # (3, 3, 8, co)
    w = w.reshape(_NTAPS * _CSLOT, co)                            # (72, co)
    bias_rows = jnp.zeros((_CSLOT, co), w.dtype).at[0].set(bias)  # (8, co)
    return jnp.concatenate([w, bias_rows], axis=0).T              # (co, 80)


class TracedCNN:
    """JAX/Pallas equivalent of
        Traced(Sequential(Conv2d(4,8,3,p=1), ReLU, Conv2d(8,8,3,p=1), ReLU),
               depths=[0, 2]).
    forward(x) -> [conv1_out, conv2_out] (pre-ReLU activations), like the
    hook-recorded features (torch.cat over one hook call is the identity).
    """

    def __init__(self, key, cin=4, cmid=8, cout=8, dtype=jnp.float32):
        assert cin <= _CSLOT and cmid <= _CSLOT, "channels must fit one sublane tile"
        k1, k2, k3, k4 = jax.random.split(key, 4)
        # PyTorch-like parameter shapes: Conv2d weight is (Cout, Cin, 3, 3).
        self.w1_oihw = (jax.random.normal(k1, (cmid, cin, 3, 3), dtype)
                        * (1.0 / jnp.sqrt(cin * 9.0)))
        self.b1 = jax.random.normal(k2, (cmid,), dtype) * 0.01
        self.w2_oihw = (jax.random.normal(k3, (cout, cmid, 3, 3), dtype)
                        * (1.0 / jnp.sqrt(cmid * 9.0)))
        self.b2 = jax.random.normal(k4, (cout,), dtype) * 0.01

        # Kernel layout: (Cout, 80) with bias folded into column 72.
        self.w1_flat = _flatten_conv_weights(self.w1_oihw, self.b1)
        self.w2_flat = _flatten_conv_weights(self.w2_oihw, self.b2)

        self.depths = [0, 2]
        self.names = [f"enc_{d}" for d in self.depths]

    def forward(self, inp_nchw):
        f0, f2 = _fused_traced_convs(inp_nchw, self.w1_flat, self.w2_flat)
        return [f0, f2]

    __call__ = forward


if __name__ == "__main__":
    key = jax.random.PRNGKey(0)
    kp, kx = jax.random.split(key)

    model = TracedCNN(kp, cin=4, cmid=8, cout=8)

    def ref_conv(x_nchw, w_oihw, b):
        y = jax.lax.conv_general_dilated(
            x_nchw, w_oihw, window_strides=(1, 1), padding="SAME",
            dimension_numbers=("NCHW", "OIHW", "NCHW"))
        return y + b[None, :, None, None]

    ok = True
    # N=2 -> B=1, grid=2 (two TC-parallel steps); N=9 -> B=5, grid=2 with one
    # zero-padded image (exercises the lane-concatenated batched path).
    for n in (2, 9):
        x = jax.random.normal(jax.random.fold_in(kx, n), (n, 4, 16, 16), jnp.float32)
        f0, f2 = model(x)
        f0 = jax.block_until_ready(f0)
        f2 = jax.block_until_ready(f2)

        r0 = ref_conv(x, model.w1_oihw, model.b1)
        r2 = ref_conv(jnp.maximum(r0, 0.0), model.w2_oihw, model.b2)

        ok &= f0.shape == (n, 8, 16, 16) and f2.shape == (n, 8, 16, 16)
        ok &= bool(jnp.allclose(f0, r0, atol=1e-4, rtol=1e-4))
        ok &= bool(jnp.allclose(f2, r2, atol=1e-4, rtol=1e-4))

    assert ok
    print("KERNEL_OK")
</pallas_src>

<mosaic_0001>
module attributes {stable_mosaic.version = 11 : i64} {
  func.func @_fused_kernel(%arg0: i32, %arg1: memref<4x256xf32, #tpu.memory_space<vmem>>, %arg2: memref<8x80xf32, #tpu.memory_space<vmem>>, %arg3: memref<8x80xf32, #tpu.memory_space<vmem>>, %arg4: memref<8x256xf32, #tpu.memory_space<vmem>>, %arg5: memref<8x256xf32, #tpu.memory_space<vmem>>, %arg6: memref<80x256xf32, #tpu.memory_space<vmem>>) attributes {dimension_semantics = [#tpu.dimension_semantics<parallel>], iteration_bounds = array<i64: 2>, scalar_prefetch = 0 : i64, scratch_operands = 1 : i64, tpu.core_type = #tpu.core_type<tc>, window_params = [{transform_indices = @transform_0, window_bounds = array<i64: 4, 256>}, {pipeline_mode = #tpu.pipeline_mode<synchronous>, transform_indices = @transform_1, window_bounds = array<i64: 8, 80>}, {pipeline_mode = #tpu.pipeline_mode<synchronous>, transform_indices = @transform_2, window_bounds = array<i64: 8, 80>}, {transform_indices = @transform_3, window_bounds = array<i64: 8, 256>}, {transform_indices = @transform_4, window_bounds = array<i64: 8, 256>}]} {
    %0 = tpu.iota {dimensions = array<i32: 1>} : vector<1x256xi32>
    %c15_i32 = arith.constant 15 : i32
    %1 = vector.broadcast %c15_i32 : i32 to vector<1x256xi32>
    %2 = arith.andi %0, %1 : vector<1x256xi32>
    %c4_i32 = arith.constant 4 : i32
    %3 = vector.broadcast %c4_i32 : i32 to vector<1x256xi32>
    %4 = arith.shrsi %0, %3 : vector<1x256xi32>
    %c15_i32_0 = arith.constant 15 : i32
    %5 = vector.broadcast %c15_i32_0 : i32 to vector<1x256xi32>
    %6 = arith.andi %4, %5 : vector<1x256xi32>
    %c1_i32 = arith.constant 1 : i32
    %7 = vector.broadcast %c1_i32 : i32 to vector<1x256xi32>
    %8 = arith.cmpi sge, %6, %7 : vector<1x256xi32>
    %c14_i32 = arith.constant 14 : i32
    %9 = vector.broadcast %c14_i32 : i32 to vector<1x256xi32>
    %10 = arith.cmpi sle, %6, %9 : vector<1x256xi32>
    %c1_i32_1 = arith.constant 1 : i32
    %11 = vector.broadcast %c1_i32_1 : i32 to vector<1x256xi32>
    %12 = arith.cmpi sge, %2, %11 : vector<1x256xi32>
    %c14_i32_2 = arith.constant 14 : i32
    %13 = vector.broadcast %c14_i32_2 : i32 to vector<1x256xi32>
    %14 = arith.cmpi sle, %2, %13 : vector<1x256xi32>
    %15 = arith.andi %8, %12 : vector<1x256xi1>
    %16 = arith.andi %8, %14 : vector<1x256xi1>
    %17 = arith.andi %10, %12 : vector<1x256xi1>
    %18 = arith.andi %10, %14 : vector<1x256xi1>
    %19 = tpu.iota {dimensions = array<i32: 0>} : vector<8x256xi32>
    %c0_i32 = arith.constant 0 : i32
    %20 = vector.broadcast %c0_i32 : i32 to vector<8x256xi32>
    %21 = arith.cmpi eq, %19, %20 : vector<8x256xi32>
    %22 = arith.extui %21 : vector<8x256xi1> to vector<8x256xi32>
    %23 = arith.sitofp %22 : vector<8x256xi32> to vector<8x256xf32>
    %c72 = arith.constant 72 : index
    %c0 = arith.constant 0 : index
    %24 = vector.load %arg6[%c72, %c0] : memref<80x256xf32, #tpu.memory_space<vmem>>, vector<8x256xf32>
    tpu.vector_store %arg6[%c72, %c0], %23 {strides = array<i32>} : memref<80x256xf32, #tpu.memory_space<vmem>>, vector<8x256xf32>,
    %c0_3 = arith.constant 0 : index
    %c0_4 = arith.constant 0 : index
    %25 = vector.load %arg1[%c0_3, %c0_4] : memref<4x256xf32, #tpu.memory_space<vmem>>, vector<4x256xf32>
    %cst = arith.constant 0.000000e+00 : f32
    %26 = vector.broadcast %cst : f32 to vector<4x256xf32>
    %27 = tpu.concatenate %25, %26 in 0 : vector<4x256xf32>, vector<4x256xf32> -> vector<8x256xf32>
    %c17_i32 = arith.constant 17 : i32
    %28 = tpu.dynamic_rotate %27 by %c17_i32 dim 1 : vector<8x256xf32>, i32 -> vector<8x256xf32>
    %cst_5 = arith.constant 0.000000e+00 : f32
    %29 = vector.shape_cast %15 : vector<1x256xi1> to vector<1x256xi1>
    %30 = vector.broadcast %29 : vector<1x256xi1> to vector<8x256xi1>
    %31 = vector.broadcast %cst_5 : f32 to vector<8x256xf32>
    %32 = arith.select %30, %28, %31 : vector<8x256xi1>, vector<8x256xf32>
    %c0_6 = arith.constant 0 : index
    %c0_7 = arith.constant 0 : index
    %33 = vector.load %arg6[%c0_6, %c0_7] : memref<80x256xf32, #tpu.memory_space<vmem>>, vector<8x256xf32>
    tpu.vector_store %arg6[%c0_6, %c0_7], %32 {strides = array<i32>} : memref<80x256xf32, #tpu.memory_space<vmem>>, vector<8x256xf32>,
    %c16_i32 = arith.constant 16 : i32
    %34 = tpu.dynamic_rotate %27 by %c16_i32 dim 1 : vector<8x256xf32>, i32 -> vector<8x256xf32>
    %cst_8 = arith.constant 0.000000e+00 : f32
    %35 = vector.shape_cast %8 : vector<1x256xi1> to vector<1x256xi1>
    %36 = vector.broadcast %35 : vector<1x256xi1> to vector<8x256xi1>
    %37 = vector.broadcast %cst_8 : f32 to vector<8x256xf32>
    %38 = arith.select %36, %34, %37 : vector<8x256xi1>, vector<8x256xf32>
    %c8 = arith.constant 8 : index
    %c0_9 = arith.constant 0 : index
    %39 = vector.load %arg6[%c8, %c0_9] : memref<80x256xf32, #tpu.memory_space<vmem>>, vector<8x256xf32>
    tpu.vector_store %arg6[%c8, %c0_9], %38 {strides = array<i32>} : memref<80x256xf32, #tpu.memory_space<vmem>>, vector<8x256xf32>,
    %c15_i32_10 = arith.constant 15 : i32
    %40 = tpu.dynamic_rotate %27 by %c15_i32_10 dim 1 : vector<8x256xf32>, i32 -> vector<8x256xf32>
    %cst_11 = arith.constant 0.000000e+00 : f32
    %41 = vector.shape_cast %16 : vector<1x256xi1> to vector<1x256xi1>
    %42 = vector.broadcast %41 : vector<1x256xi1> to vector<8x256xi1>
    %43 = vector.broadcast %cst_11 : f32 to vector<8x256xf32>
    %44 = arith.select %42, %40, %43 : vector<8x256xi1>, vector<8x256xf32>
    %c16 = arith.constant 16 : index
    %c0_12 = arith.constant 0 : index
    %45 = vector.load %arg6[%c16, %c0_12] : memref<80x256xf32, #tpu.memory_space<vmem>>, vector<8x256xf32>
    tpu.vector_store %arg6[%c16, %c0_12], %44 {strides = array<i32>} : memref<80x256xf32, #tpu.memory_space<vmem>>, vector<8x256xf32>,
    %c1_i32_13 = arith.constant 1 : i32
    %46 = tpu.dynamic_rotate %27 by %c1_i32_13 dim 1 : vector<8x256xf32>, i32 -> vector<8x256xf32>
    %cst_14 = arith.constant 0.000000e+00 : f32
    %47 = vector.shape_cast %12 : vector<1x256xi1> to vector<1x256xi1>
    %48 = vector.broadcast %47 : vector<1x256xi1> to vector<8x256xi1>
    %49 = vector.broadcast %cst_14 : f32 to vector<8x256xf32>
    %50 = arith.select %48, %46, %49 : vector<8x256xi1>, vector<8x256xf32>
    %c24 = arith.constant 24 : index
    %c0_15 = arith.constant 0 : index
    %51 = vector.load %arg6[%c24, %c0_15] : memref<80x256xf32, #tpu.memory_space<vmem>>, vector<8x256xf32>
    tpu.vector_store %arg6[%c24, %c0_15], %50 {strides = array<i32>} : memref<80x256xf32, #tpu.memory_space<vmem>>, vector<8x256xf32>,
    %c32 = arith.constant 32 : index
    %c0_16 = arith.constant 0 : index
    %52 = vector.load %arg6[%c32, %c0_16] : memref<80x256xf32, #tpu.memory_space<vmem>>, vector<8x256xf32>
    tpu.vector_store %arg6[%c32, %c0_16], %27 {strides = array<i32>} : memref<80x256xf32, #tpu.memory_space<vmem>>, vector<8x256xf32>,
    %c255_i32 = arith.constant 255 : i32
    %53 = tpu.dynamic_rotate %27 by %c255_i32 dim 1 : vector<8x256xf32>, i32 -> vector<8x256xf32>
    %cst_17 = arith.constant 0.000000e+00 : f32
    %54 = vector.shape_cast %14 : vector<1x256xi1> to vector<1x256xi1>
    %55 = vector.broadcast %54 : vector<1x256xi1> to vector<8x256xi1>
    %56 = vector.broadcast %cst_17 : f32 to vector<8x256xf32>
    %57 = arith.select %55, %53, %56 : vector<8x256xi1>, vector<8x256xf32>
    %c40 = arith.constant 40 : index
    %c0_18 = arith.constant 0 : index
    %58 = vector.load %arg6[%c40, %c0_18] : memref<80x256xf32, #tpu.memory_space<vmem>>, vector<8x256xf32>
    tpu.vector_store %arg6[%c40, %c0_18], %57 {strides = array<i32>} : memref<80x256xf32, #tpu.memory_space<vmem>>, vector<8x256xf32>,
    %c241_i32 = arith.constant 241 : i32
    %59 = tpu.dynamic_rotate %27 by %c241_i32 dim 1 : vector<8x256xf32>, i32 -> vector<8x256xf32>
    %cst_19 = arith.constant 0.000000e+00 : f32
    %60 = vector.shape_cast %17 : vector<1x256xi1> to vector<1x256xi1>
    %61 = vector.broadcast %60 : vector<1x256xi1> to vector<8x256xi1>
    %62 = vector.broadcast %cst_19 : f32 to vector<8x256xf32>
    %63 = arith.select %61, %59, %62 : vector<8x256xi1>, vector<8x256xf32>
    %c48 = arith.constant 48 : index
    %c0_20 = arith.constant 0 : index
    %64 = vector.load %arg6[%c48, %c0_20] : memref<80x256xf32, #tpu.memory_space<vmem>>, vector<8x256xf32>
    tpu.vector_store %arg6[%c48, %c0_20], %63 {strides = array<i32>} : memref<80x256xf32, #tpu.memory_space<vmem>>, vector<8x256xf32>,
    %c240_i32 = arith.constant 240 : i32
    %65 = tpu.dynamic_rotate %27 by %c240_i32 dim 1 : vector<8x256xf32>, i32 -> vector<8x256xf32>
    %cst_21 = arith.constant 0.000000e+00 : f32
    %66 = vector.shape_cast %10 : vector<1x256xi1> to vector<1x256xi1>
    %67 = vector.broadcast %66 : vector<1x256xi1> to vector<8x256xi1>
    %68 = vector.broadcast %cst_21 : f32 to vector<8x256xf32>
    %69 = arith.select %67, %65, %68 : vector<8x256xi1>, vector<8x256xf32>
    %c56 = arith.constant 56 : index
    %c0_22 = arith.constant 0 : index
    %70 = vector.load %arg6[%c56, %c0_22] : memref<80x256xf32, #tpu.memory_space<vmem>>, vector<8x256xf32>
    tpu.vector_store %arg6[%c56, %c0_22], %69 {strides = array<i32>} : memref<80x256xf32, #tpu.memory_space<vmem>>, vector<8x256xf32>,
    %c239_i32 = arith.constant 239 : i32
    %71 = tpu.dynamic_rotate %27 by %c239_i32 dim 1 : vector<8x256xf32>, i32 -> vector<8x256xf32>
    %cst_23 = arith.constant 0.000000e+00 : f32
    %72 = vector.shape_cast %18 : vector<1x256xi1> to vector<1x256xi1>
    %73 = vector.broadcast %72 : vector<1x256xi1> to vector<8x256xi1>
    %74 = vector.broadcast %cst_23 : f32 to vector<8x256xf32>
    %75 = arith.select %73, %71, %74 : vector<8x256xi1>, vector<8x256xf32>
    %c64 = arith.constant 64 : index
    %c0_24 = arith.constant 0 : index
    %76 = vector.load %arg6[%c64, %c0_24] : memref<80x256xf32, #tpu.memory_space<vmem>>, vector<8x256xf32>
    tpu.vector_store %arg6[%c64, %c0_24], %75 {strides = array<i32>} : memref<80x256xf32, #tpu.memory_space<vmem>>, vector<8x256xf32>,
    %c0_25 = arith.constant 0 : index
    %c0_26 = arith.constant 0 : index
    %77 = vector.load %arg2[%c0_25, %c0_26] : memref<8x80xf32, #tpu.memory_space<vmem>>, vector<8x80xf32>
    %c0_27 = arith.constant 0 : index
    %c0_28 = arith.constant 0 : index
    %78 = vector.load %arg6[%c0_27, %c0_28] : memref<80x256xf32, #tpu.memory_space<vmem>>, vector<80x256xf32>
    %cst_29 = arith.constant dense<0.000000e+00> : vector<8x256xf32>
    %79 = tpu.matmul %77, %78, %cst_29 {dimension_numbers = #tpu.dot_dimension_numbers<[1], [0], [0], [1], [0, 0, 1, 1], [], []>} : vector<8x80xf32>, vector<80x256xf32>, vector<8x256xf32> -> vector<8x256xf32>
    %c0_30 = arith.constant 0 : index
    %c0_31 = arith.constant 0 : index
    %80 = vector.load %arg4[%c0_30, %c0_31] : memref<8x256xf32, #tpu.memory_space<vmem>>, vector<8x256xf32>
    tpu.vector_store %arg4[%c0_30, %c0_31], %79 {strides = array<i32>} : memref<8x256xf32, #tpu.memory_space<vmem>>, vector<8x256xf32>,
    %cst_32 = arith.constant 0.000000e+00 : f32
    %81 = vector.broadcast %cst_32 : f32 to vector<8x256xf32>
    %82 = arith.maximumf %79, %81 : vector<8x256xf32>
    %c17_i32_33 = arith.constant 17 : i32
    %83 = tpu.dynamic_rotate %82 by %c17_i32_33 dim 1 : vector<8x256xf32>, i32 -> vector<8x256xf32>
    %cst_34 = arith.constant 0.000000e+00 : f32
    %84 = vector.shape_cast %15 : vector<1x256xi1> to vector<1x256xi1>
    %85 = vector.broadcast %84 : vector<1x256xi1> to vector<8x256xi1>
    %86 = vector.broadcast %cst_34 : f32 to vector<8x256xf32>
    %87 = arith.select %85, %83, %86 : vector<8x256xi1>, vector<8x256xf32>
    %c0_35 = arith.constant 0 : index
    %c0_36 = arith.constant 0 : index
    %88 = vector.load %arg6[%c0_35, %c0_36] : memref<80x256xf32, #tpu.memory_space<vmem>>, vector<8x256xf32>
    tpu.vector_store %arg6[%c0_35, %c0_36], %87 {strides = array<i32>} : memref<80x256xf32, #tpu.memory_space<vmem>>, vector<8x256xf32>,
    %c16_i32_37 = arith.constant 16 : i32
    %89 = tpu.dynamic_rotate %82 by %c16_i32_37 dim 1 : vector<8x256xf32>, i32 -> vector<8x256xf32>
    %cst_38 = arith.constant 0.000000e+00 : f32
    %90 = vector.shape_cast %8 : vector<1x256xi1> to vector<1x256xi1>
    %91 = vector.broadcast %90 : vector<1x256xi1> to vector<8x256xi1>
    %92 = vector.broadcast %cst_38 : f32 to vector<8x256xf32>
    %93 = arith.select %91, %89, %92 : vector<8x256xi1>, vector<8x256xf32>
    %c8_39 = arith.constant 8 : index
    %c0_40 = arith.constant 0 : index
    %94 = vector.load %arg6[%c8_39, %c0_40] : memref<80x256xf32, #tpu.memory_space<vmem>>, vector<8x256xf32>
    tpu.vector_store %arg6[%c8_39, %c0_40], %93 {strides = array<i32>} : memref<80x256xf32, #tpu.memory_space<vmem>>, vector<8x256xf32>,
    %c15_i32_41 = arith.constant 15 : i32
    %95 = tpu.dynamic_rotate %82 by %c15_i32_41 dim 1 : vector<8x256xf32>, i32 -> vector<8x256xf32>
    %cst_42 = arith.constant 0.000000e+00 : f32
    %96 = vector.shape_cast %16 : vector<1x256xi1> to vector<1x256xi1>
    %97 = vector.broadcast %96 : vector<1x256xi1> to vector<8x256xi1>
    %98 = vector.broadcast %cst_42 : f32 to vector<8x256xf32>
    %99 = arith.select %97, %95, %98 : vector<8x256xi1>, vector<8x256xf32>
    %c16_43 = arith.constant 16 : index
    %c0_44 = arith.constant 0 : index
    %100 = vector.load %arg6[%c16_43, %c0_44] : memref<80x256xf32, #tpu.memory_space<vmem>>, vector<8x256xf32>
    tpu.vector_store %arg6[%c16_43, %c0_44], %99 {strides = array<i32>} : memref<80x256xf32, #tpu.memory_space<vmem>>, vector<8x256xf32>,
    %c1_i32_45 = arith.constant 1 : i32
    %101 = tpu.dynamic_rotate %82 by %c1_i32_45 dim 1 : vector<8x256xf32>, i32 -> vector<8x256xf32>
    %cst_46 = arith.constant 0.000000e+00 : f32
    %102 = vector.shape_cast %12 : vector<1x256xi1> to vector<1x256xi1>
    %103 = vector.broadcast %102 : vector<1x256xi1> to vector<8x256xi1>
    %104 = vector.broadcast %cst_46 : f32 to vector<8x256xf32>
    %105 = arith.select %103, %101, %104 : vector<8x256xi1>, vector<8x256xf32>
    %c24_47 = arith.constant 24 : index
    %c0_48 = arith.constant 0 : index
    %106 = vector.load %arg6[%c24_47, %c0_48] : memref<80x256xf32, #tpu.memory_space<vmem>>, vector<8x256xf32>
    tpu.vector_store %arg6[%c24_47, %c0_48], %105 {strides = array<i32>} : memref<80x256xf32, #tpu.memory_space<vmem>>, vector<8x256xf32>,
    %c32_49 = arith.constant 32 : index
    %c0_50 = arith.constant 0 : index
    %107 = vector.load %arg6[%c32_49, %c0_50] : memref<80x256xf32, #tpu.memory_space<vmem>>, vector<8x256xf32>
    tpu.vector_store %arg6[%c32_49, %c0_50], %82 {strides = array<i32>} : memref<80x256xf32, #tpu.memory_space<vmem>>, vector<8x256xf32>,
    %c255_i32_51 = arith.constant 255 : i32
    %108 = tpu.dynamic_rotate %82 by %c255_i32_51 dim 1 : vector<8x256xf32>, i32 -> vector<8x256xf32>
    %cst_52 = arith.constant 0.000000e+00 : f32
    %109 = vector.shape_cast %14 : vector<1x256xi1> to vector<1x256xi1>
    %110 = vector.broadcast %109 : vector<1x256xi1> to vector<8x256xi1>
    %111 = vector.broadcast %cst_52 : f32 to vector<8x256xf32>
    %112 = arith.select %110, %108, %111 : vector<8x256xi1>, vector<8x256xf32>
    %c40_53 = arith.constant 40 : index
    %c0_54 = arith.constant 0 : index
    %113 = vector.load %arg6[%c40_53, %c0_54] : memref<80x256xf32, #tpu.memory_space<vmem>>, vector<8x256xf32>
    tpu.vector_store %arg6[%c40_53, %c0_54], %112 {strides = array<i32>} : memref<80x256xf32, #tpu.memory_space<vmem>>, vector<8x256xf32>,
    %c241_i32_55 = arith.constant 241 : i32
    %114 = tpu.dynamic_rotate %82 by %c241_i32_55 dim 1 : vector<8x256xf32>, i32 -> vector<8x256xf32>
    %cst_56 = arith.constant 0.000000e+00 : f32
    %115 = vector.shape_cast %17 : vector<1x256xi1> to vector<1x256xi1>
    %116 = vector.broadcast %115 : vector<1x256xi1> to vector<8x256xi1>
    %117 = vector.broadcast %cst_56 : f32 to vector<8x256xf32>
    %118 = arith.select %116, %114, %117 : vector<8x256xi1>, vector<8x256xf32>
    %c48_57 = arith.constant 48 : index
    %c0_58 = arith.constant 0 : index
    %119 = vector.load %arg6[%c48_57, %c0_58] : memref<80x256xf32, #tpu.memory_space<vmem>>, vector<8x256xf32>
    tpu.vector_store %arg6[%c48_57, %c0_58], %118 {strides = array<i32>} : memref<80x256xf32, #tpu.memory_space<vmem>>, vector<8x256xf32>,
    %c240_i32_59 = arith.constant 240 : i32
    %120 = tpu.dynamic_rotate %82 by %c240_i32_59 dim 1 : vector<8x256xf32>, i32 -> vector<8x256xf32>
    %cst_60 = arith.constant 0.000000e+00 : f32
    %121 = vector.shape_cast %10 : vector<1x256xi1> to vector<1x256xi1>
    %122 = vector.broadcast %121 : vector<1x256xi1> to vector<8x256xi1>
    %123 = vector.broadcast %cst_60 : f32 to vector<8x256xf32>
    %124 = arith.select %122, %120, %123 : vector<8x256xi1>, vector<8x256xf32>
    %c56_61 = arith.constant 56 : index
    %c0_62 = arith.constant 0 : index
    %125 = vector.load %arg6[%c56_61, %c0_62] : memref<80x256xf32, #tpu.memory_space<vmem>>, vector<8x256xf32>
    tpu.vector_store %arg6[%c56_61, %c0_62], %124 {strides = array<i32>} : memref<80x256xf32, #tpu.memory_space<vmem>>, vector<8x256xf32>,
    %c239_i32_63 = arith.constant 239 : i32
    %126 = tpu.dynamic_rotate %82 by %c239_i32_63 dim 1 : vector<8x256xf32>, i32 -> vector<8x256xf32>
    %cst_64 = arith.constant 0.000000e+00 : f32
    %127 = vector.shape_cast %18 : vector<1x256xi1> to vector<1x256xi1>
    %128 = vector.broadcast %127 : vector<1x256xi1> to vector<8x256xi1>
    %129 = vector.broadcast %cst_64 : f32 to vector<8x256xf32>
    %130 = arith.select %128, %126, %129 : vector<8x256xi1>, vector<8x256xf32>
    %c64_65 = arith.constant 64 : index
    %c0_66 = arith.constant 0 : index
    %131 = vector.load %arg6[%c64_65, %c0_66] : memref<80x256xf32, #tpu.memory_space<vmem>>, vector<8x256xf32>
    tpu.vector_store %arg6[%c64_65, %c0_66], %130 {strides = array<i32>} : memref<80x256xf32, #tpu.memory_space<vmem>>, vector<8x256xf32>,
    %c0_67 = arith.constant 0 : index
    %c0_68 = arith.constant 0 : index
    %132 = vector.load %arg3[%c0_67, %c0_68] : memref<8x80xf32, #tpu.memory_space<vmem>>, vector<8x80xf32>
    %c0_69 = arith.constant 0 : index
    %c0_70 = arith.constant 0 : index
    %133 = vector.load %arg6[%c0_69, %c0_70] : memref<80x256xf32, #tpu.memory_space<vmem>>, vector<80x256xf32>
    %cst_71 = arith.constant dense<0.000000e+00> : vector<8x256xf32>
    %134 = tpu.matmul %132, %133, %cst_71 {dimension_numbers = #tpu.dot_dimension_numbers<[1], [0], [0], [1], [0, 0, 1, 1], [], []>} : vector<8x80xf32>, vector<80x256xf32>, vector<8x256xf32> -> vector<8x256xf32>
    %c0_72 = arith.constant 0 : index
    %c0_73 = arith.constant 0 : index
    %135 = vector.load %arg5[%c0_72, %c0_73] : memref<8x256xf32, #tpu.memory_space<vmem>>, vector<8x256xf32>
    tpu.vector_store %arg5[%c0_72, %c0_73], %134 {strides = array<i32>} : memref<8x256xf32, #tpu.memory_space<vmem>>, vector<8x256xf32>,
    return
  }
  func.func @transform_0(%arg0: i32) -> (i32, i32) {
    %c0_i32 = arith.constant 0 : i32
    %c0_i32_0 = arith.constant 0 : i32
    return %c0_i32, %arg0 : i32, i32
  }
  func.func @transform_1(%arg0: i32) -> (i32, i32) {
    %c0_i32 = arith.constant 0 : i32
    %c0_i32_0 = arith.constant 0 : i32
    %c0_i32_1 = arith.constant 0 : i32
    return %c0_i32, %c0_i32_0 : i32, i32
  }
  func.func @transform_2(%arg0: i32) -> (i32, i32) {
    %c0_i32 = arith.constant 0 : i32
    %c0_i32_0 = arith.constant 0 : i32
    %c0_i32_1 = arith.constant 0 : i32
    return %c0_i32, %c0_i32_0 : i32, i32
  }
  func.func @transform_3(%arg0: i32) -> (i32, i32) {
    %c0_i32 = arith.constant 0 : i32
    %c0_i32_0 = arith.constant 0 : i32
    return %c0_i32, %arg0 : i32, i32
  }
  func.func @transform_4(%arg0: i32) -> (i32, i32) {
    %c0_i32 = arith.constant 0 : i32
    %c0_i32_0 = arith.constant 0 : i32
    return %c0_i32, %arg0 : i32, i32
  }
}

</mosaic_0001>

<llo_original>
// kernel: _fused_traced_convs.1
$region0: #{_fused_traced_convs.1}
  #allocation0 [shape = 'u32[]', space=smem, size = 0x4, offset = 0x4, fixed_abs, tag = 'smem constant byte address 0x4 - core index']
  #allocation1 [shape = 'u32[72,128]{1,0:T(1,128)}', space=vmem, size = 0x9000, scoped, tag = 'internal scratch']
  #allocation2 [shape = 'f32[80,256]{1,0:T(8,128)}', space=vmem, size = 0x14000, scoped, tag = 'scratch operand']
  %s0 = inlined_call_operand.vmem [shape: f32[4,512], index: 0, kind: input, shape index: {}]
  %s1 = inlined_call_operand.vmem [shape: f32[8,80], index: 1, kind: input, shape index: {}]
  %s2 = inlined_call_operand.vmem [shape: f32[8,80], index: 2, kind: input, shape index: {}]
  %s3 = inlined_call_operand.vmem [shape: f32[8,512], index: 3, kind: output, shape index: {0}]
  %s4 = inlined_call_operand.vmem [shape: f32[8,512], index: 4, kind: output, shape index: {1}]
  %5 = xla_tuple %s3, %s4
  %s6 = sld [smem:[#allocation0]]
  $region53: #{_fused_traced_convs.1} parent=0
    _
  %s8 = ssub.s32 1, %s6
  %s9 = scalar_select 0, %s8, %s6
  loop: start=0, step=1, limit=4
  $region2: #{_fused_traced_convs.1} parent=0 // loop_pre_header
    _
  $region3: #{_fused_traced_convs.1} parent=0 // loop_header
    %s11 = sphi 0, %s15
    %p12 = scmp.ge.s32.totalorder %s11, 4
    %s21 = sphi 0, %s23
    %s24 = sphi 0, %s21
    %s25 = sphi 0, %s24
    %s41 = sphi 0, %s25
    %s45 = sphi 0, %s45
    %s47 = sphi 0, %s45
    %s48 = sphi 0, %s47
    %s62 = sphi 0, %s48
    %s66 = sphi 0, %s66
    %s68 = sphi 0, %s66
    %s69 = sphi 0, %s68
    %s83 = sphi 0, %s69
    %s89 = sphi 0, %s91
    %s92 = sphi 0, %s89
    %s93 = sphi 0, %s92
    %s109 = sphi 0, %s93
    %s115 = sphi 0, %s117
    %s118 = sphi 0, %s115
    %s119 = sphi 0, %s118
    %s135 = sphi 0, %s119
  $region4: #{_fused_traced_convs.1} parent=0 // loop_header_branch
    %14 = sbr.rel (%p12) target = $region8
  $region5: #{_fused_traced_convs.1} parent=0 // loop_body
    %s16 = ssub.s32 %s11, 1
    %s17 = ssub.s32 %s11, 2
    %s18 = sadd.s32 %s11, 1
    %s19 = ssub.s32 %s11, %s18
    %p20 = scmp.eq.s32.totalorder %s19, 0
    %s22 = sadd.s32 %s21, 1
    %s23 = scalar_select %p20, %s21, %s22
    %p26 = pneg %p20
    %p27 = scmp.eq.s32.totalorder %s11, 1
    %p28 = por %p26, %p27
    %p29 = scmp.ne.s32.totalorder %s21, %s24
    %p30 = scmp.eq.s32.totalorder %s11, 0
    %p31 = por %p29, %p30
    %p32 = scmp.ne.s32.totalorder %s21, %s24
    %p33 = scmp.eq.s32.totalorder %s16, 1
    %p34 = por %p32, %p33
    %p35 = scmp.ne.s32.totalorder %s24, %s25
    %p36 = scmp.eq.s32.totalorder %s16, 0
    %p37 = por %p35, %p36
    %p38 = scmp.ne.s32.totalorder %s24, %s25
    %p39 = scmp.eq.s32.totalorder %s17, 1
    %p40 = por %p38, %p39
    %p42 = scmp.ne.s32.totalorder %s25, %s41
    %p43 = scmp.eq.s32.totalorder %s17, 0
    %p44 = por %p42, %p43
    %s46 = sadd.s32 %s45, 1
    %p49 = scmp.eq.s32.totalorder %s11, 1
    %p50 = scmp.ne.s32.totalorder %s45, %s47
    %p51 = scmp.eq.s32.totalorder %s11, 0
    %p52 = por %p50, %p51
    %p53 = scmp.ne.s32.totalorder %s45, %s47
    %p54 = scmp.eq.s32.totalorder %s16, 1
    %p55 = por %p53, %p54
    %p56 = scmp.ne.s32.totalorder %s47, %s48
    %p57 = scmp.eq.s32.totalorder %s16, 0
    %p58 = por %p56, %p57
    %p59 = scmp.ne.s32.totalorder %s47, %s48
    %p60 = scmp.eq.s32.totalorder %s17, 1
    %p61 = por %p59, %p60
    %p63 = scmp.ne.s32.totalorder %s48, %s62
    %p64 = scmp.eq.s32.totalorder %s17, 0
    %p65 = por %p63, %p64
    %s67 = sadd.s32 %s66, 1
    %p70 = scmp.eq.s32.totalorder %s11, 1
    %p71 = scmp.ne.s32.totalorder %s66, %s68
    %p72 = scmp.eq.s32.totalorder %s11, 0
    %p73 = por %p71, %p72
    %p74 = scmp.ne.s32.totalorder %s66, %s68
    %p75 = scmp.eq.s32.totalorder %s16, 1
    %p76 = por %p74, %p75
    %p77 = scmp.ne.s32.totalorder %s68, %s69
    %p78 = scmp.eq.s32.totalorder %s16, 0
    %p79 = por %p77, %p78
    %p80 = scmp.ne.s32.totalorder %s68, %s69
    %p81 = scmp.eq.s32.totalorder %s17, 1
    %p82 = por %p80, %p81
    %p84 = scmp.ne.s32.totalorder %s69, %s83
    %p85 = scmp.eq.s32.totalorder %s17, 0
    %p86 = por %p84, %p85
    %s87 = ssub.s32 %s11, %s18
    %p88 = scmp.eq.s32.totalorder %s87, 0
    %s90 = sadd.s32 %s89, 1
    %s91 = scalar_select %p88, %s89, %s90
    %p94 = pneg %p88
    %p95 = scmp.eq.s32.totalorder %s11, 1
    %p96 = por %p94, %p95
    %p97 = scmp.ne.s32.totalorder %s89, %s92
    %p98 = scmp.eq.s32.totalorder %s11, 0
    %p99 = por %p97, %p98
    %p100 = scmp.ne.s32.totalorder %s89, %s92
    %p101 = scmp.eq.s32.totalorder %s16, 1
    %p102 = por %p100, %p101
    %p103 = scmp.ne.s32.totalorder %s92, %s93
    %p104 = scmp.eq.s32.totalorder %s16, 0
    %p105 = por %p103, %p104
    %p106 = scmp.ne.s32.totalorder %s92, %s93
    %p107 = scmp.eq.s32.totalorder %s17, 1
    %p108 = por %p106, %p107
    %p110 = scmp.ne.s32.totalorder %s93, %s109
    %p111 = scmp.eq.s32.totalorder %s17, 0
    %p112 = por %p110, %p111
    %s113 = ssub.s32 %s11, %s18
    %p114 = scmp.eq.s32.totalorder %s113, 0
    %s116 = sadd.s32 %s115, 1
    %s117 = scalar_select %p114, %s115, %s116
    %p120 = pneg %p114
    %p121 = scmp.eq.s32.totalorder %s11, 1
    %p122 = por %p120, %p121
    %p123 = scmp.ne.s32.totalorder %s115, %s118
    %p124 = scmp.eq.s32.totalorder %s11, 0
    %p125 = por %p123, %p124
    %p126 = scmp.ne.s32.totalorder %s115, %s118
    %p127 = scmp.eq.s32.totalorder %s16, 1
    %p128 = por %p126, %p127
    %p129 = scmp.ne.s32.totalorder %s118, %s119
    %p130 = scmp.eq.s32.totalorder %s16, 0
    %p131 = por %p129, %p130
    %p132 = scmp.ne.s32.totalorder %s118, %s119
    %p133 = scmp.eq.s32.totalorder %s17, 1
    %p134 = por %p132, %p133
    %p136 = scmp.ne.s32.totalorder %s119, %s135
    %p137 = scmp.eq.s32.totalorder %s17, 0
    %p138 = por %p136, %p137
    %p139 = scmp.le.s32.totalorder 1, %s11
    %p140 = scmp.lt.s32.totalorder %s11, 3
    %p141 = pnand %p139, %p140
    %p142 = pneg %p141
    // Predicated region
    $region9: #{_fused_traced_convs.1} parent=5 // pred_check
      _
    $region10: #{_fused_traced_convs.1} parent=5 // pred_check_branch
      %144 = sbr.rel (%p141) target = $region12
    $region11: #{_fused_traced_convs.1} parent=5 // pred_region
      %s145 = ssub.s32 %s11, 1
      // Predicated region
      $region13: #{_fused_traced_convs.1} parent=11 // pred_check
        %p146 = pneg %p58
      $region14: #{_fused_traced_convs.1} parent=11 // pred_check_branch
        %148 = sbr.rel (%p146) target = $region16
      $region15: #{_fused_traced_convs.1} parent=11 // pred_region
        _
      $region16: #{_fused_traced_convs.1} parent=11 // pred_fallthru
        _
      // Predicated region
      $region17: #{_fused_traced_convs.1} parent=11 // pred_check
        %p149 = pneg %p79
      $region18: #{_fused_traced_convs.1} parent=11 // pred_check_branch
        %151 = sbr.rel (%p149) target = $region20
      $region19: #{_fused_traced_convs.1} parent=11 // pred_region
        _
      $region20: #{_fused_traced_convs.1} parent=11 // pred_fallthru
        _
    $region12: #{_fused_traced_convs.1} parent=5 // pred_fallthru
      _
    %p152 = scmp.lt.s32.totalorder %s11, 2
    // Predicated region
    $region21: #{_fused_traced_convs.1} parent=5 // pred_check
      %p153 = pneg %p152
    $region22: #{_fused_traced_convs.1} parent=5 // pred_check_branch
      %155 = sbr.rel (%p153) target = $region24
    $region23: #{_fused_traced_convs.1} parent=5 // pred_region
      // Predicated region
      $region25: #{_fused_traced_convs.1} parent=23 // pred_check
        %p156 = pneg %p31
      $region26: #{_fused_traced_convs.1} parent=23 // pred_check_branch
        %158 = sbr.rel (%p156) target = $region28
      $region27: #{_fused_traced_convs.1} parent=23 // pred_region
        %s159 = smul.u32 2, %s11
        %p160 = scmp.lt.s32.totalorder %s159, 3
        %s161 = scalar_select %p160, %s159, 3
        %s162 = smul.addr %s161, 4
        %s163 = scalar_lea.vmem %s0, %s162
        %s164 = smul.u32 2, %s11
      $region28: #{_fused_traced_convs.1} parent=23 // pred_fallthru
        _
    $region24: #{_fused_traced_convs.1} parent=5 // pred_fallthru
      _
    %p165 = scmp.le.s32.totalorder 1, %s11
    %p166 = scmp.lt.s32.totalorder %s11, 3
    %p167 = pnand %p165, %p166
    %p168 = pneg %p167
    // Predicated region
    $region29: #{_fused_traced_convs.1} parent=5 // pred_check
      _
    $region30: #{_fused_traced_convs.1} parent=5 // pred_check_branch
      %170 = sbr.rel (%p167) target = $region32
    $region31: #{_fused_traced_convs.1} parent=5 // pred_region
      %s171 = ssub.s32 %s11, 1
      %s172 = smul.u32 2, %s16
      %p173 = scmp.lt.s32.totalorder %s172, 3
      %s174 = scalar_select %p173, %s172, 3
      %s175 = smul.addr %s174, 4
      %s176 = scalar_lea.vmem %s0, %s175
      %p177 = pneg %p37
      %p178 = pneg %p34
      %p179 = pneg %p58
      %p180 = pneg %p55
      %p181 = pneg %p79
      %p182 = pneg %p76
      %p183 = pneg %p105
      %p184 = pneg %p102
      %s185 = smul.u32 2, %s16
      %p186 = scmp.lt.s32.totalorder %s185, 3
      %s187 = scalar_select %p186, %s185, 3
      %s188 = smul.addr %s187, 8
      %s189 = scalar_lea.vmem %s3, %s188
      %p190 = pneg %p131
      %p191 = pneg %p128
      %s192 = smul.u32 2, %s16
      %p193 = scmp.lt.s32.totalorder %s192, 3
      %s194 = scalar_select %p193, %s192, 3
      %s195 = smul.addr %s194, 8
      %s196 = scalar_lea.vmem %s4, %s195
      %s197 = smul.u32 2, %s16
      %p198 = scmp.lt.s32.totalorder %s197, 3
      %s199 = scalar_select %p198, %s197, 3
      %s200 = smul.addr %s199, 4
      %s201 = scalar_lea.vmem %s0, %s200
      %s202 = smul.u32 2, %s16
      %s203 = smul.u32 2, %s16
      %p204 = scmp.lt.s32.totalorder %s203, 3
      %s205 = scalar_select %p204, %s203, 3
      %s206 = smul.addr %s205, 8
      %s207 = scalar_lea.vmem %s3, %s206
      %s208 = smul.u32 2, %s16
      %s209 = smul.u32 2, %s16
      %p210 = scmp.lt.s32.totalorder %s209, 3
      %s211 = scalar_select %p210, %s209, 3
      %s212 = smul.addr %s211, 8
      %s213 = scalar_lea.vmem %s4, %s212
      %s214 = smul.u32 2, %s16
      %v215 = vlaneseq
      %v216 = vand.u32 %v215, 127
      %v217 = vadd.s32 %v216, 128
      %v218 = vand.u32 %v216, 15
      %v219 = vand.u32 %v217, 15
      %v220 = vshra.s32 %v216, 4
      %v221 = vshra.s32 %v217, 4
      %v222 = vand.u32 %v220, 15
      %v223 = vand.u32 %v221, 15
      %vm224 = vcmp.ge.s32.totalorder %v222, 1
      %vm225 = vcmp.ge.s32.totalorder %v223, 1
      %vm226 = vcmp.le.s32.totalorder %v222, 14
      %vm227 = vcmp.le.s32.totalorder %v223, 14
      %vm228 = vcmp.ge.s32.totalorder %v218, 1
      %vm229 = vcmp.ge.s32.totalorder %v219, 1
      %vm230 = vcmp.le.s32.totalorder %v218, 14
      %vm231 = vcmp.le.s32.totalorder %v219, 14
      %vm232 = vmand %vm224, %vm228
      %vm233 = vmand %vm225, %vm229
      %vm234 = vmand %vm224, %vm230
      %vm235 = vmand %vm225, %vm231
      %vm236 = vmand %vm226, %vm228
      %vm237 = vmand %vm227, %vm229
      %vm238 = vmand %vm226, %vm230
      %vm239 = vmand %vm227, %vm231
      %v240 = vlaneseq
      %v241 = vshrl.u32 %v240, 7
      %vm242 = vcmp.eq.s32.totalorder %v241, 0
      %v243 = vsel %vm242, 1, 0
      %v244 = vcvt.s32.f32 %v243
      %245 = vst [vmem:[#allocation2 + $0x90] sm:$0xff] %v244
      %246 = vst [vmem:[#allocation2 + $0x98] sm:$0xff] %v244
      %v247 = vld [vmem:[%s201] sm:$0xff]
      %249 = vst [vmem:[#allocation1] ss:$2 sm:$0xff] %v247
      %v250 = vld.sshfl [vmem:[#allocation1] sm:$0xff pattern:$0x75316420]
      %v251 = vld.sshfl [vmem:[#allocation1 + $0x8] sm:$0xff pattern:$0x75316420]
      %vm254 = vcmask 1043456
      %v255 = vsel %vm254, %v250, 0.0
      %v256 = vsel %vm254, %v251, 0.0
      %257 = vrot.lane.b32.xlu0 %v255, 17
      %v258 = vpop.permute.xlu0 %257
      %259 = vrot.lane.b32.xlu0 %v256, 17
      %v260 = vpop.permute.xlu0 %259
      %vm261 = vcmp.lt.s32.totalorder %v216, 17
      %v262 = vsel %vm261, %v258, %v260
      %v263 = vsel %vm261, %v260, %v258
      %v264 = vsel %vm232, 1, 0
      %v265 = vsel %vm233, 1, 0
      %vm266 = vcmp.eq.s32.totalorder %v264, 1
      %vm267 = vcmp.eq.s32.totalorder %v265, 1
      %v268 = vsel %vm266, %v263, 0.0
      %v269 = vsel %vm267, %v262, 0.0
      %270 = vst [vmem:[#allocation2] sm:$0xff] %v268
      %271 = vst [vmem:[#allocation2 + $0x8] sm:$0xff] %v269
      %272 = vrot.lane.b32.xlu0 %v255, 16
      %v273 = vpop.permute.xlu0 %272
      %274 = vrot.lane.b32.xlu0 %v256, 16
      %v275 = vpop.permute.xlu0 %274
      %vm276 = vcmp.lt.s32.totalorder %v216, 16
      %v277 = vsel %vm276, %v273, %v275
      %v278 = vsel %vm276, %v275, %v273
      %v279 = vsel %vm224, 1, 0
      %v280 = vsel %vm225, 1, 0
      %vm281 = vcmp.eq.s32.totalorder %v279, 1
      %vm282 = vcmp.eq.s32.totalorder %v280, 1
      %v283 = vsel %vm281, %v278, 0.0
      %v284 = vsel %vm282, %v277, 0.0
      %285 = vst [vmem:[#allocation2 + $0x10] sm:$0xff] %v283
      %286 = vst [vmem:[#allocation2 + $0x18] sm:$0xff] %v284
      %287 = vrot.lane.b32.xlu0 %v255, 15
      %v288 = vpop.permute.xlu0 %287
      %289 = vrot.lane.b32.xlu0 %v256, 15
      %v290 = vpop.permute.xlu0 %289
      %vm291 = vcmp.lt.s32.totalorder %v216, 15
      %v292 = vsel %vm291, %v288, %v290
      %v293 = vsel %vm291, %v290, %v288
      %v294 = vsel %vm234, 1, 0
      %v295 = vsel %vm235, 1, 0
      %vm296 = vcmp.eq.s32.totalorder %v294, 1
      %vm297 = vcmp.eq.s32.totalorder %v295, 1
      %v298 = vsel %vm296, %v293, 0.0
      %v299 = vsel %vm297, %v292, 0.0
      %300 = vst [vmem:[#allocation2 + $0x20] sm:$0xff] %v298
      %301 = vst [vmem:[#allocation2 + $0x28] sm:$0xff] %v299
      %302 = vrot.lane.b32.xlu0 %v255, 1
      %v303 = vpop.permute.xlu0 %302
      %304 = vrot.lane.b32.xlu0 %v256, 1
      %v305 = vpop.permute.xlu0 %304
      %vm306 = vcmp.lt.s32.totalorder %v216, 1
      %v307 = vsel %vm306, %v303, %v305
      %v308 = vsel %vm306, %v305, %v303
      %v309 = vsel %vm228, 1, 0
      %v310 = vsel %vm229, 1, 0
      %vm311 = vcmp.eq.s32.totalorder %v309, 1
      %vm312 = vcmp.eq.s32.totalorder %v310, 1
      %v313 = vsel %vm311, %v308, 0.0
      %v314 = vsel %vm312, %v307, 0.0
      %315 = vst [vmem:[#allocation2 + $0x30] sm:$0xff] %v313
      %316 = vst [vmem:[#allocation2 + $0x38] sm:$0xff] %v314
      %317 = vst [vmem:[#allocation2 + $0x40] sm:$0xff] %v255
      %318 = vst [vmem:[#allocation2 + $0x48] sm:$0xff] %v256
      %319 = vrot.lane.b32.xlu0 %v255, 127
      %v320 = vpop.permute.xlu0 %319
      %321 = vrot.lane.b32.xlu0 %v256, 127
      %v322 = vpop.permute.xlu0 %321
      %vm323 = vcmp.lt.s32.totalorder %v216, 127
      %v324 = vsel %vm323, %v320, %v322
      %v325 = vsel %vm323, %v322, %v320
      %v326 = vsel %vm230, 1, 0
      %v327 = vsel %vm231, 1, 0
      %vm328 = vcmp.eq.s32.totalorder %v326, 1
      %vm329 = vcmp.eq.s32.totalorder %v327, 1
      %v330 = vsel %vm328, %v324, 0.0
      %v331 = vsel %vm329, %v325, 0.0
      %332 = vst [vmem:[#allocation2 + $0x50] sm:$0xff] %v330
      %333 = vst [vmem:[#allocation2 + $0x58] sm:$0xff] %v331
      %334 = vrot.lane.b32.xlu0 %v255, 113
      %v335 = vpop.permute.xlu0 %334
      %336 = vrot.lane.b32.xlu0 %v256, 113
      %v337 = vpop.permute.xlu0 %336
      %vm338 = vcmp.lt.s32.totalorder %v216, 113
      %v339 = vsel %vm338, %v335, %v337
      %v340 = vsel %vm338, %v337, %v335
      %v341 = vsel %vm236, 1, 0
      %v342 = vsel %vm237, 1, 0
      %vm343 = vcmp.eq.s32.totalorder %v341, 1
      %vm344 = vcmp.eq.s32.totalorder %v342, 1
      %v345 = vsel %vm343, %v339, 0.0
      %v346 = vsel %vm344, %v340, 0.0
      %347 = vst [vmem:[#allocation2 + $0x60] sm:$0xff] %v345
      %348 = vst [vmem:[#allocation2 + $0x68] sm:$0xff] %v346
      %349 = vrot.lane.b32.xlu0 %v255, 112
      %v350 = vpop.permute.xlu0 %349
      %351 = vrot.lane.b32.xlu0 %v256, 112
      %v352 = vpop.permute.xlu0 %351
      %vm353 = vcmp.lt.s32.totalorder %v216, 112
      %v354 = vsel %vm353, %v350, %v352
      %v355 = vsel %vm353, %v352, %v350
      %v356 = vsel %vm226, 1, 0
      %v357 = vsel %vm227, 1, 0
      %vm358 = vcmp.eq.s32.totalorder %v356, 1
      %vm359 = vcmp.eq.s32.totalorder %v357, 1
      %v360 = vsel %vm358, %v354, 0.0
      %v361 = vsel %vm359, %v355, 0.0
      %362 = vst [vmem:[#allocation2 + $0x70] sm:$0xff] %v360
      %363 = vst [vmem:[#allocation2 + $0x78] sm:$0xff] %v361
      %364 = vrot.lane.b32.xlu0 %v255, 111
      %v365 = vpop.permute.xlu0 %364
      %366 = vrot.lane.b32.xlu0 %v256, 111
      %v367 = vpop.permute.xlu0 %366
      %vm368 = vcmp.lt.s32.totalorder %v216, 111
      %v369 = vsel %vm368, %v365, %v367
      %v370 = vsel %vm368, %v367, %v365
      %v371 = vsel %vm238, 1, 0
      %v372 = vsel %vm239, 1, 0
      %vm373 = vcmp.eq.s32.totalorder %v371, 1
      %vm374 = vcmp.eq.s32.totalorder %v372, 1
      %v375 = vsel %vm373, %v369, 0.0
      %v376 = vsel %vm374, %v370, 0.0
      %377 = vst [vmem:[#allocation2 + $0x80] sm:$0xff] %v375
      %378 = vst [vmem:[#allocation2 + $0x88] sm:$0xff] %v376
      %v379 = vld [vmem:[%s1] sm:$0xff]
      %v380 = vld [vmem:[#allocation2] sm:$0xff]
      %v381 = vld [vmem:[#allocation2 + $0x8] sm:$0xff]
      %v382 = vld [vmem:[#allocation2 + $0x10] sm:$0xff]
      %v383 = vld [vmem:[#allocation2 + $0x18] sm:$0xff]
      %v384 = vld [vmem:[#allocation2 + $0x20] sm:$0xff]
      %v385 = vld [vmem:[#allocation2 + $0x28] sm:$0xff]
      %v386 = vld [vmem:[#allocation2 + $0x30] sm:$0xff]
      %v387 = vld [vmem:[#allocation2 + $0x38] sm:$0xff]
      %v388 = vld [vmem:[#allocation2 + $0x40] sm:$0xff]
      %v389 = vld [vmem:[#allocation2 + $0x48] sm:$0xff]
      %v390 = vld [vmem:[#allocation2 + $0x50] sm:$0xff]
      %v391 = vld [vmem:[#allocation2 + $0x58] sm:$0xff]
      %v392 = vld [vmem:[#allocation2 + $0x60] sm:$0xff]
      %v393 = vld [vmem:[#allocation2 + $0x68] sm:$0xff]
      %v394 = vld [vmem:[#allocation2 + $0x70] sm:$0xff]
      %v395 = vld [vmem:[#allocation2 + $0x78] sm:$0xff]
      %v396 = vld [vmem:[#allocation2 + $0x80] sm:$0xff]
      %v397 = vld [vmem:[#allocation2 + $0x88] sm:$0xff]
      %v398 = vld [vmem:[#allocation2 + $0x90] sm:$0xff]
      %v399 = vld [vmem:[#allocation2 + $0x98] sm:$0xff]
      %vm400 = vcmask 654336
      %v402 = vsel %vm400, %v379, 0
      %404 = vmatpush.msra.mxu0 0.0
      %405 = vmatpush.msra.mxu0 0.0
      %406 = vmatpush.msra.mxu0 0.0
      %407 = vmatpush.msra.mxu0 0.0
      %408 = vmatpush.msra.mxu0 0.0
      %409 = vmatpush.msra.mxu0 0.0
      %410 = vmatpush.msra.mxu0 %v398
      %411 = vmatpush.msra.mxu0 %v396
      %412 = vmatpush.msra.mxu0 %v394
      %413 = vmatpush.msra.mxu0 %v392
      %414 = vmatpush.msra.mxu0 %v390
      %415 = vmatpush.msra.mxu0 %v388
      %416 = vmatpush.msra.mxu0 %v386
      %417 = vmatpush.msra.mxu0 %v384
      %418 = vmatpush.msra.mxu0 %v382
      %419 = vmatpush.msra.mxu0 %v380
      %420 = vmatmul.f32.gmra.mxu0 %v402
      %v421 = vpop.f32.mrf.mxu0
      %v422 = vadd.f32 0.0, %v421
      %423 = vdwg.mxu0
      %424 = vmatpush.msra.mxu0 0.0
      %425 = vmatpush.msra.mxu0 0.0
      %426 = vmatpush.msra.mxu0 0.0
      %427 = vmatpush.msra.mxu0 0.0
      %428 = vmatpush.msra.mxu0 0.0
      %429 = vmatpush.msra.mxu0 0.0
      %430 = vmatpush.msra.mxu0 %v399
      %431 = vmatpush.msra.mxu0 %v397
      %432 = vmatpush.msra.mxu0 %v395
      %433 = vmatpush.msra.mxu0 %v393
      %434 = vmatpush.msra.mxu0 %v391
      %435 = vmatpush.msra.mxu0 %v389
      %436 = vmatpush.msra.mxu0 %v387
      %437 = vmatpush.msra.mxu0 %v385
      %438 = vmatpush.msra.mxu0 %v383
      %439 = vmatpush.msra.mxu0 %v381
      %440 = vmatmul.f32.gmra.mxu0 %v402
      %v441 = vpop.f32.mrf.mxu0
      %v442 = vadd.f32 0.0, %v441
      %443 = vdwg.mxu0
      %444 = vst [vmem:[%s207] sm:$0xff] %v422
      %445 = vst [vmem:[%s207 + $0x8] sm:$0xff] %v442
      %v446 = vmax.f32 %v422, 0.0
      %v447 = vmax.f32 %v442, 0.0
      %448 = vrot.lane.b32.xlu0 %v446, 17
      %v449 = vpop.permute.xlu0 %448
      %450 = vrot.lane.b32.xlu0 %v447, 17
      %v451 = vpop.permute.xlu0 %450
      %v452 = vsel %vm261, %v449, %v451
      %v453 = vsel %vm261, %v451, %v449
      %v454 = vsel %vm266, %v453, 0.0
      %v455 = vsel %vm267, %v452, 0.0
      %456 = vst [vmem:[#allocation2] sm:$0xff] %v454
      %457 = vst [vmem:[#allocation2 + $0x8] sm:$0xff] %v455
      %458 = vrot.lane.b32.xlu0 %v446, 16
      %v459 = vpop.permute.xlu0 %458
      %460 = vrot.lane.b32.xlu0 %v447, 16
      %v461 = vpop.permute.xlu0 %460
      %v462 = vsel %vm276, %v459, %v461
      %v463 = vsel %vm276, %v461, %v459
      %v464 = vsel %vm281, %v463, 0.0
      %v465 = vsel %vm282, %v462, 0.0
      %466 = vst [vmem:[#allocation2 + $0x10] sm:$0xff] %v464
      %467 = vst [vmem:[#allocation2 + $0x18] sm:$0xff] %v465
      %468 = vrot.lane.b32.xlu0 %v446, 15
      %v469 = vpop.permute.xlu0 %468
      %470 = vrot.lane.b32.xlu0 %v447, 15
      %v471 = vpop.permute.xlu0 %470
      %v472 = vsel %vm291, %v469, %v471
      %v473 = vsel %vm291, %v471, %v469
      %v474 = vsel %vm296, %v473, 0.0
      %v475 = vsel %vm297, %v472, 0.0
      %476 = vst [vmem:[#allocation2 + $0x20] sm:$0xff] %v474
      %477 = vst [vmem:[#allocation2 + $0x28] sm:$0xff] %v475
      %478 = vrot.lane.b32.xlu0 %v446, 1
      %v479 = vpop.permute.xlu0 %478
      %480 = vrot.lane.b32.xlu0 %v447, 1
      %v481 = vpop.permute.xlu0 %480
      %v482 = vsel %vm306, %v479, %v481
      %v483 = vsel %vm306, %v481, %v479
      %v484 = vsel %vm311, %v483, 0.0
      %v485 = vsel %vm312, %v482, 0.0
      %486 = vst [vmem:[#allocation2 + $0x30] sm:$0xff] %v484
      %487 = vst [vmem:[#allocation2 + $0x38] sm:$0xff] %v485
      %488 = vst [vmem:[#allocation2 + $0x40] sm:$0xff] %v446
      %489 = vst [vmem:[#allocation2 + $0x48] sm:$0xff] %v447
      %490 = vrot.lane.b32.xlu0 %v446, 127
      %v491 = vpop.permute.xlu0 %490
      %492 = vrot.lane.b32.xlu0 %v447, 127
      %v493 = vpop.permute.xlu0 %492
      %v494 = vsel %vm323, %v491, %v493
      %v495 = vsel %vm323, %v493, %v491
      %v496 = vsel %vm328, %v494, 0.0
      %v497 = vsel %vm329, %v495, 0.0
      %498 = vst [vmem:[#allocation2 + $0x50] sm:$0xff] %v496
      %499 = vst [vmem:[#allocation2 + $0x58] sm:$0xff] %v497
      %500 = vrot.lane.b32.xlu0 %v446, 113
      %v501 = vpop.permute.xlu0 %500
      %502 = vrot.lane.b32.xlu0 %v447, 113
      %v503 = vpop.permute.xlu0 %502
      %v504 = vsel %vm338, %v501, %v503
      %v505 = vsel %vm338, %v503, %v501
      %v506 = vsel %vm343, %v504, 0.0
      %v507 = vsel %vm344, %v505, 0.0
      %508 = vst [vmem:[#allocation2 + $0x60] sm:$0xff] %v506
      %509 = vst [vmem:[#allocation2 + $0x68] sm:$0xff] %v507
      %510 = vrot.lane.b32.xlu0 %v446, 112
      %v511 = vpop.permute.xlu0 %510
      %512 = vrot.lane.b32.xlu0 %v447, 112
      %v513 = vpop.permute.xlu0 %512
      %v514 = vsel %vm353, %v511, %v513
      %v515 = vsel %vm353, %v513, %v511
      %v516 = vsel %vm358, %v514, 0.0
      %v517 = vsel %vm359, %v515, 0.0
      %518 = vst [vmem:[#allocation2 + $0x70] sm:$0xff] %v516
      %519 = vst [vmem:[#allocation2 + $0x78] sm:$0xff] %v517
      %520 = vrot.lane.b32.xlu0 %v446, 111
      %v521 = vpop.permute.xlu0 %520
      %522 = vrot.lane.b32.xlu0 %v447, 111
      %v523 = vpop.permute.xlu0 %522
      %v524 = vsel %vm368, %v521, %v523
      %v525 = vsel %vm368, %v523, %v521
      %v526 = vsel %vm373, %v524, 0.0
      %v527 = vsel %vm374, %v525, 0.0
      %528 = vst [vmem:[#allocation2 + $0x80] sm:$0xff] %v526
      %529 = vst [vmem:[#allocation2 + $0x88] sm:$0xff] %v527
      %v530 = vld [vmem:[%s2] sm:$0xff]
      %v531 = vld [vmem:[#allocation2] sm:$0xff]
      %v532 = vld [vmem:[#allocation2 + $0x8] sm:$0xff]
      %v533 = vld [vmem:[#allocation2 + $0x10] sm:$0xff]
      %v534 = vld [vmem:[#allocation2 + $0x18] sm:$0xff]
      %v535 = vld [vmem:[#allocation2 + $0x20] sm:$0xff]
      %v536 = vld [vmem:[#allocation2 + $0x28] sm:$0xff]
      %v537 = vld [vmem:[#allocation2 + $0x30] sm:$0xff]
      %v538 = vld [vmem:[#allocation2 + $0x38] sm:$0xff]
      %v539 = vld [vmem:[#allocation2 + $0x40] sm:$0xff]
      %v540 = vld [vmem:[#allocation2 + $0x48] sm:$0xff]
      %v541 = vld [vmem:[#allocation2 + $0x50] sm:$0xff]
      %v542 = vld [vmem:[#allocation2 + $0x58] sm:$0xff]
      %v543 = vld [vmem:[#allocation2 + $0x60] sm:$0xff]
      %v544 = vld [vmem:[#allocation2 + $0x68] sm:$0xff]
      %v545 = vld [vmem:[#allocation2 + $0x70] sm:$0xff]
      %v546 = vld [vmem:[#allocation2 + $0x78] sm:$0xff]
      %v547 = vld [vmem:[#allocation2 + $0x80] sm:$0xff]
      %v548 = vld [vmem:[#allocation2 + $0x88] sm:$0xff]
      %v549 = vld [vmem:[#allocation2 + $0x90] sm:$0xff]
      %v550 = vld [vmem:[#allocation2 + $0x98] sm:$0xff]
      %v552 = vsel %vm400, %v530, 0
      %554 = vmatpush.msra.mxu0 0.0
      %555 = vmatpush.msra.mxu0 0.0
      %556 = vmatpush.msra.mxu0 0.0
      %557 = vmatpush.msra.mxu0 0.0
      %558 = vmatpush.msra.mxu0 0.0
      %559 = vmatpush.msra.mxu0 0.0
      %560 = vmatpush.msra.mxu0 %v549
      %561 = vmatpush.msra.mxu0 %v547
      %562 = vmatpush.msra.mxu0 %v545
      %563 = vmatpush.msra.mxu0 %v543
      %564 = vmatpush.msra.mxu0 %v541
      %565 = vmatpush.msra.mxu0 %v539
      %566 = vmatpush.msra.mxu0 %v537
      %567 = vmatpush.msra.mxu0 %v535
      %568 = vmatpush.msra.mxu0 %v533
      %569 = vmatpush.msra.mxu0 %v531
      %570 = vmatmul.f32.gmra.mxu0 %v552
      %v571 = vpop.f32.mrf.mxu0
      %v572 = vadd.f32 0.0, %v571
      %573 = vdwg.mxu0
      %574 = vmatpush.msra.mxu0 0.0
      %575 = vmatpush.msra.mxu0 0.0
      %576 = vmatpush.msra.mxu0 0.0
      %577 = vmatpush.msra.mxu0 0.0
      %578 = vmatpush.msra.mxu0 0.0
      %579 = vmatpush.msra.mxu0 0.0
      %580 = vmatpush.msra.mxu0 %v550
      %581 = vmatpush.msra.mxu0 %v548
      %582 = vmatpush.msra.mxu0 %v546
      %583 = vmatpush.msra.mxu0 %v544
      %584 = vmatpush.msra.mxu0 %v542
      %585 = vmatpush.msra.mxu0 %v540
      %586 = vmatpush.msra.mxu0 %v538
      %587 = vmatpush.msra.mxu0 %v536
      %588 = vmatpush.msra.mxu0 %v534
      %589 = vmatpush.msra.mxu0 %v532
      %590 = vmatmul.f32.gmra.mxu0 %v552
      %v591 = vpop.f32.mrf.mxu0
      %v592 = vadd.f32 0.0, %v591
      %593 = vdwg.mxu0
      %594 = vst [vmem:[%s213] sm:$0xff] %v572
      %595 = vst [vmem:[%s213 + $0x8] sm:$0xff] %v592
      %s596 = smul.u32 2, %s16
      %p597 = scmp.lt.s32.totalorder %s596, 3
      %s598 = scalar_select %p597, %s596, 3
      %s599 = smul.addr %s598, 8
      %s600 = scalar_lea.vmem %s3, %s599
      %s601 = smul.u32 2, %s16
      %p602 = scmp.lt.s32.totalorder %s601, 3
      %s603 = scalar_select %p602, %s601, 3
      %s604 = smul.addr %s603, 8
      %s605 = scalar_lea.vmem %s4, %s604
      // Predicated region
      $region33: #{_fused_traced_convs.1} parent=31 // pred_check
        %p606 = pneg %p102
      $region34: #{_fused_traced_convs.1} parent=31 // pred_check_branch
        %608 = sbr.rel (%p606) target = $region36
      $region35: #{_fused_traced_convs.1} parent=31 // pred_region
        %s609 = smul.u32 2, %s16
      $region36: #{_fused_traced_convs.1} parent=31 // pred_fallthru
        _
      // Predicated region
      $region37: #{_fused_traced_convs.1} parent=31 // pred_check
        %p610 = pneg %p128
      $region38: #{_fused_traced_convs.1} parent=31 // pred_check_branch
        %612 = sbr.rel (%p610) target = $region40
      $region39: #{_fused_traced_convs.1} parent=31 // pred_region
        %s613 = smul.u32 2, %s16
      $region40: #{_fused_traced_convs.1} parent=31 // pred_fallthru
        _
    $region32: #{_fused_traced_convs.1} parent=5 // pred_fallthru
      _
    %p614 = scmp.le.s32.totalorder 2, %s11
    // Predicated region
    $region41: #{_fused_traced_convs.1} parent=5 // pred_check
      %p615 = pneg %p614
    $region42: #{_fused_traced_convs.1} parent=5 // pred_check_branch
      %617 = sbr.rel (%p615) target = $region44
    $region43: #{_fused_traced_convs.1} parent=5 // pred_region
      %s618 = ssub.s32 %s11, 2
      // Predicated region
      $region45: #{_fused_traced_convs.1} parent=43 // pred_check
        %p619 = pneg %p108
      $region46: #{_fused_traced_convs.1} parent=43 // pred_check_branch
        %621 = sbr.rel (%p619) target = $region48
      $region47: #{_fused_traced_convs.1} parent=43 // pred_region
        %s622 = smul.u32 2, %s17
        %p623 = scmp.lt.s32.totalorder %s622, 3
        %s624 = scalar_select %p623, %s622, 3
        %s625 = smul.addr %s624, 8
        %s626 = scalar_lea.vmem %s3, %s625
      $region48: #{_fused_traced_convs.1} parent=43 // pred_fallthru
        _
      // Predicated region
      $region49: #{_fused_traced_convs.1} parent=43 // pred_check
        %p627 = pneg %p134
      $region50: #{_fused_traced_convs.1} parent=43 // pred_check_branch
        %629 = sbr.rel (%p627) target = $region52
      $region51: #{_fused_traced_convs.1} parent=43 // pred_region
        %s630 = smul.u32 2, %s17
        %p631 = scmp.lt.s32.totalorder %s630, 3
        %s632 = scalar_select %p631, %s630, 3
        %s633 = smul.addr %s632, 8
        %s634 = scalar_lea.vmem %s4, %s633
      $region52: #{_fused_traced_convs.1} parent=43 // pred_fallthru
        _
    $region44: #{_fused_traced_convs.1} parent=5 // pred_fallthru
      _
  $region6: #{_fused_traced_convs.1} parent=0 // loop_footer
    %s15 = sadd.s32 1, %s11
  $region7: #{_fused_traced_convs.1} parent=0 // loop_footer_branch
    %10 = sbr.rel target = $region3
  $region8: #{_fused_traced_convs.1} parent=0 // loop_exit
    _

</llo_original>
